<compile_context>
chip_gen: v6e
topology: v6e:2x2x1
jax: 0.10.0
libtpu: 0.0.40
codegen_flags: <defaults>
</compile_context>

<pallas_src>
import functools
import math

import jax
import jax.numpy as jnp
from jax.experimental import pallas as pl
from jax.experimental.pallas import tpu as pltpu


def _round_up(n, m):
    return ((n + m - 1) // m) * m


def _cdiv(a, b):
    return -(-a // b)


def _vmem_cap_bytes():
    """Per-core VMEM budget: ~80% of physical.

    v7x (64 MiB/TC) -> ~51 MiB, v5e/v6e (128 MiB) -> ~102 MiB, matching the
    review's 48-56 MiB / ~100 MiB recommendations. Falls back to the most
    conservative (v7x-sized) assumption if the query is unavailable.
    """
    phys = 64 << 20
    try:
        info = pltpu.get_tpu_info()
        for attr in ("vmem_capacity_bytes", "vmem_bytes", "vmem_size_bytes"):
            val = getattr(info, attr, None)
            if val:
                phys = int(val)
                break
    except Exception:
        pass
    return max(int(phys * 0.8), 48 << 20)


def _resnet_kernel(x_ref, win_hbm, bin_hbm, wh_hbm, bh_hbm, wout_hbm, bout_hbm,
                   o_ref,
                   win_v, bin_v, wh_v, bh_v, wout_v, bout_v, *dma_sems,
                   depth, sqrt_pbs, mm_dtype, stream_wh, unroll):
    f32 = jnp.float32

    if stream_wh:
        wh_sem = dma_sems[0]
        # Prefetch layer-0 hidden weights for this batch tile (async; overlaps
        # the resident-weight copies and the input projection below).
        pltpu.make_async_copy(wh_hbm.at[0], wh_v.at[0], wh_sem.at[0]).start()

    # Copy the single-buffered resident weights into VMEM scratch once per
    # sweep of the inner batch axis.  The outer axis is "parallel": each
    # TensorCore starts every outer index at inner index 0, so its scratch is
    # always initialized before any compute that reads it.
    @pl.when(pl.program_id(1) == 0)
    def _load_weights():
        pltpu.sync_copy(win_hbm, win_v)
        pltpu.sync_copy(bin_hbm, bin_v)
        pltpu.sync_copy(bh_hbm, bh_v)
        pltpu.sync_copy(wout_hbm, wout_v)
        pltpu.sync_copy(bout_hbm, bout_v)
        if not stream_wh:
            pltpu.sync_copy(wh_hbm, wh_v)

    x = x_ref[...]                                        # (TB, Din_p), bf16
    h = jnp.dot(x, win_v[...], preferred_element_type=f32) + bin_v[...]

    def layer(d, h):
        if stream_wh:
            slot = jax.lax.rem(d, 2)
            pltpu.make_async_copy(wh_hbm.at[0], wh_v.at[slot],
                                  wh_sem.at[slot]).wait()

            @pl.when(d + 1 < depth)
            def _prefetch_next():
                pltpu.make_async_copy(wh_hbm.at[d + 1], wh_v.at[1 - slot],
                                      wh_sem.at[1 - slot]).start()

            w = wh_v[slot]
        else:
            w = wh_v[d]
        t = jnp.dot(h.astype(mm_dtype), w, preferred_element_type=f32) + bh_v[d]
        return jnp.maximum(t, 0.0) + h

    h = jax.lax.fori_loop(0, depth, layer, h, unroll=unroll)

    y = jnp.dot(h.astype(mm_dtype), wout_v[...],
                preferred_element_type=f32) + bout_v[...]

    # Row-wise L2 normalization * sqrt(Pbs); one EUP rsqrt per row.
    # No epsilon on purpose (matches torch: an all-zero row yields inf/nan too).
    sumsq = jnp.sum(y * y, axis=1, keepdims=True)
    scale = jax.lax.rsqrt(sumsq) * sqrt_pbs
    o_ref[...] = (y * scale).astype(o_ref.dtype)


def resnet_forward(x, params, *, depth, pbs, block_b=256,
                   matmul_dtype=jnp.bfloat16, stream_hidden_weights=None):
    """x: (B, Ns*K*2) float32. params: dict of f32 weights (see init_params)."""
    f32 = jnp.float32
    B, d_in = x.shape
    width = params["w_in"].shape[1]
    d_out = params["w_out"].shape[1]
    assert params["w_in"].shape[0] == d_in
    assert params["w_h"].shape == (depth, width, width)

    LANE = 128
    SUB = 16                                   # bf16 sublane packing for x tiles
    d_in_p = _round_up(d_in, LANE)
    width_p = _round_up(width, LANE)
    d_out_p = _round_up(d_out, LANE)
    mm_isz = jnp.dtype(matmul_dtype).itemsize

    cap = _vmem_cap_bytes()
    wh_bytes = depth * width_p * width_p * mm_isz
    if stream_hidden_weights is None:
        # Stream per-layer only when the full hidden-weight stack would not
        # leave ~24 MiB of headroom for tiles / activations / compiler scratch.
        stream_wh = wh_bytes > cap - (24 << 20)
    else:
        stream_wh = bool(stream_hidden_weights)
    if stream_wh:
        # Large batch tiles keep the per-layer weight DMA hidden behind the matmul.
        block_b = max(block_b, 512)

    # ---- batch tiling: big tiles, an even number of them (v7x megacore) ----
    tb = _round_up(min(block_b, _round_up(B, SUB)), SUB)
    n_tiles = _cdiv(B, tb)
    if n_tiles == 1 and B > SUB:
        n_tiles = 2                            # give both v7x TensorCores work
    elif n_tiles > 1 and n_tiles % 2:
        n_tiles += 1
    tb = _round_up(_cdiv(B, n_tiles), SUB)
    n_tiles = _cdiv(B, tb)
    if n_tiles > 1 and n_tiles % 2:
        n_tiles += 1
    B_p = n_tiles * tb
    g_outer = 2 if n_tiles % 2 == 0 else 1
    g_inner = n_tiles // g_outer

    def pad2(a, rows, cols):
        return jnp.pad(a, ((0, rows - a.shape[0]), (0, cols - a.shape[1])))

    # Zero padding is exact: padded columns of h and y stay 0, so the row L2
    # norm is unchanged.  x ships as bf16 (halves its DMA bytes); biases stay f32.
    x_p = pad2(x.astype(f32), B_p, d_in_p).astype(matmul_dtype)
    w_in = pad2(params["w_in"], d_in_p, width_p).astype(matmul_dtype)
    b_in = pad2(params["b_in"], 1, width_p).astype(f32)
    w_h = jnp.pad(params["w_h"],
                  ((0, 0), (0, width_p - width), (0, width_p - width))
                  ).astype(matmul_dtype)
    b_h = jnp.pad(params["b_h"],
                  ((0, 0), (0, 0), (0, width_p - width))).astype(f32)
    w_out = pad2(params["w_out"], width_p, d_out_p).astype(matmul_dtype)
    b_out = pad2(params["b_out"], 1, d_out_p).astype(f32)

    # Cap the depth-loop unroll so h/t live ranges don't blow the vreg file.
    full_unroll = (depth <= 8) and (tb * width_p <= 64 * 1024) and not stream_wh
    unroll = depth if full_unroll else min(depth, 2)
    unroll = max(unroll, 1)

    kernel = functools.partial(
        _resnet_kernel, depth=depth, sqrt_pbs=float(math.sqrt(pbs)),
        mm_dtype=matmul_dtype, stream_wh=stream_wh, unroll=unroll)

    # ---- VMEM budget: single-buffered weights + pipelined x/out tiles +
    #      hidden-activation working set ----
    small_w_vmem = ((d_in_p * width_p + width_p * d_out_p) * mm_isz
                    + (width_p + depth * width_p + d_out_p) * 4)
    wh_vmem = (2 if stream_wh else depth) * width_p * width_p * mm_isz
    pipeline_bytes = 2 * (tb * d_in_p * mm_isz + tb * d_out_p * 4)
    act_bytes = tb * width_p * (4 + 4 + mm_isz) + tb * d_out_p * 8
    vmem_need = small_w_vmem + wh_vmem + pipeline_bytes + act_bytes + (4 << 20)
    vmem_limit = int(min(cap, max(32 << 20, vmem_need)))

    # ---- scheduler hint ----
    flops = 2 * B_p * (d_in_p * width_p + depth * width_p * width_p
                       + width_p * d_out_p)
    small_hbm = sum(int(a.size) * a.dtype.itemsize
                    for a in (w_in, b_in, b_h, w_out, b_out))
    wh_hbm = int(w_h.size) * w_h.dtype.itemsize * (n_tiles if stream_wh else 1)
    bytes_accessed = (int(x_p.size) * x_p.dtype.itemsize + small_hbm + wh_hbm
                      + B_p * d_out_p * 4)
    cost = pl.CostEstimate(flops=int(flops), transcendentals=int(B_p),
                           bytes_accessed=int(bytes_accessed))

    scratch = [
        pltpu.VMEM((d_in_p, width_p), matmul_dtype),                # w_in
        pltpu.VMEM((1, width_p), f32),                              # b_in
        pltpu.VMEM(((2 if stream_wh else depth), width_p, width_p),
                   matmul_dtype),                                   # w_h
        pltpu.VMEM((depth, 1, width_p), f32),                       # b_h
        pltpu.VMEM((width_p, d_out_p), matmul_dtype),               # w_out
        pltpu.VMEM((1, d_out_p), f32),                              # b_out
    ]
    if stream_wh:
        scratch.append(pltpu.SemaphoreType.DMA((2,)))

    x_spec = pl.BlockSpec((tb, d_in_p), lambda io, ii: (io * g_inner + ii, 0))
    o_spec = pl.BlockSpec((tb, d_out_p), lambda io, ii: (io * g_inner + ii, 0))
    hbm = pl.BlockSpec(memory_space=pl.ANY)

    y_p = pl.pallas_call(
        kernel,
        out_shape=jax.ShapeDtypeStruct((B_p, d_out_p), f32),
        grid_spec=pltpu.PrefetchScalarGridSpec(
            num_scalar_prefetch=0,
            grid=(g_outer, g_inner),
            in_specs=[x_spec, hbm, hbm, hbm, hbm, hbm, hbm],
            out_specs=o_spec,
            scratch_shapes=scratch),
        compiler_params=pltpu.CompilerParams(
            dimension_semantics=("parallel", "arbitrary"),
            vmem_limit_bytes=vmem_limit),
        cost_estimate=cost,
    )(x_p, w_in, b_in, w_h, b_h, w_out, b_out)

    return y_p[:B, :d_out]


def init_params(key, d_in, width, d_out, depth):
    ks = jax.random.split(key, 6)
    s = 0.1
    return {
        "w_in": s * jax.random.normal(ks[0], (d_in, width), jnp.float32),
        "b_in": s * jax.random.normal(ks[1], (1, width), jnp.float32),
        "w_h": s * jax.random.normal(ks[2], (depth, width, width), jnp.float32),
        "b_h": s * jax.random.normal(ks[3], (depth, 1, width), jnp.float32),
        "w_out": s * jax.random.normal(ks[4], (width, d_out), jnp.float32),
        "b_out": s * jax.random.normal(ks[5], (1, d_out), jnp.float32),
    }


def resnet_reference(x, params, *, depth, pbs, matmul_dtype=jnp.bfloat16):
    """Pure-JAX reference mirroring the kernel's bf16-operand / f32-accum matmuls."""
    f32 = jnp.float32
    mm = matmul_dtype
    h = jnp.dot(x.astype(mm), params["w_in"].astype(mm),
                preferred_element_type=f32) + params["b_in"]
    for d in range(depth):
        t = jnp.dot(h.astype(mm), params["w_h"][d].astype(mm),
                    preferred_element_type=f32) + params["b_h"][d]
        h = jnp.maximum(t, 0.0) + h
    y = jnp.dot(h.astype(mm), params["w_out"].astype(mm),
                preferred_element_type=f32) + params["b_out"]
    power = jnp.sqrt(jnp.sum(y * y, axis=1, keepdims=True))
    return y / power * math.sqrt(pbs)


if __name__ == "__main__":
    # Small config mirroring args.Ns, args.K, args.width_p, args.depth_p, args.Pbs
    Ns, K = 4, 2
    width_cfg = 32
    depth_cfg = 3
    Pbs = 2.0
    batch = 64              # with block_b=16: 4 tiles -> grid (2, 2), exercising
                            # both the "parallel" outer axis and weight reuse on
                            # the inner axis.

    d_in = Ns * K * 2       # 16
    d_out = Ns * 2          # 8

    key = jax.random.PRNGKey(0)
    k_x, k_p = jax.random.split(key)
    x = jax.random.normal(k_x, (batch, d_in), jnp.float32)
    params = init_params(k_p, d_in, width_cfg, d_out, depth_cfg)

    out = resnet_forward(x, params, depth=depth_cfg, pbs=Pbs, block_b=16)
    out = jax.block_until_ready(out)

    ref = resnet_reference(x, params, depth=depth_cfg, pbs=Pbs)
    assert out.shape == (batch, d_out)
    assert jnp.allclose(out, ref, atol=2e-3, rtol=2e-3), "mismatch vs reference"

    print("KERNEL_OK")
</pallas_src>

<mosaic_0001>
module attributes {stable_mosaic.version = 11 : i64} {
  func.func @_resnet_kernel(%arg0: i32, %arg1: i32, %arg2: memref<16x128xbf16, #tpu.memory_space<vmem>>, %arg3: memref<128x128xbf16, #tpu.memory_space<any>>, %arg4: memref<1x128xf32, #tpu.memory_space<any>>, %arg5: memref<3x128x128xbf16, #tpu.memory_space<any>>, %arg6: memref<3x1x128xf32, #tpu.memory_space<any>>, %arg7: memref<128x128xbf16, #tpu.memory_space<any>>, %arg8: memref<1x128xf32, #tpu.memory_space<any>>, %arg9: memref<16x128xf32, #tpu.memory_space<vmem>>, %arg10: memref<128x128xbf16, #tpu.memory_space<vmem>>, %arg11: memref<1x128xf32, #tpu.memory_space<vmem>>, %arg12: memref<3x128x128xbf16, #tpu.memory_space<vmem>>, %arg13: memref<3x1x128xf32, #tpu.memory_space<vmem>>, %arg14: memref<128x128xbf16, #tpu.memory_space<vmem>>, %arg15: memref<1x128xf32, #tpu.memory_space<vmem>>) attributes {dimension_semantics = [#tpu.dimension_semantics<parallel>, #tpu.dimension_semantics<arbitrary>], iteration_bounds = array<i64: 2, 2>, scalar_prefetch = 0 : i64, scratch_operands = 6 : i64, tpu.core_type = #tpu.core_type<tc>, window_params = [{transform_indices = @transform_0, window_bounds = array<i64: 16, 128>}, {}, {}, {}, {}, {}, {}, {transform_indices = @transform_7, window_bounds = array<i64: 16, 128>}]} {
    %c0_i32 = arith.constant 0 : i32
    %0 = arith.cmpi eq, %arg1, %c0_i32 : i32
    %1 = arith.extui %0 : i1 to i32
    %c0_i32_0 = arith.constant 0 : i32
    %2 = arith.cmpi ne, %1, %c0_i32_0 : i32
    scf.if %2 {
      "tpu.region"() ({
        %63 = tpu.sem_alloc : memref<!tpu.dma_semaphore, #tpu.memory_space<semaphore_mem>>
        tpu.enqueue_dma source(%arg3 : memref<128x128xbf16, #tpu.memory_space<any>>) target(%arg10 : memref<128x128xbf16, #tpu.memory_space<vmem>>) target_semaphore(%63 : memref<!tpu.dma_semaphore, #tpu.memory_space<semaphore_mem>>)
        tpu.wait_dma2 semaphore(%63 : memref<!tpu.dma_semaphore, #tpu.memory_space<semaphore_mem>>) src(%arg3 : memref<128x128xbf16, #tpu.memory_space<any>>) dst(%arg10 : memref<128x128xbf16, #tpu.memory_space<vmem>>)
        tpu.yield
      }) : () -> ()
      "tpu.region"() ({
        %63 = tpu.sem_alloc : memref<!tpu.dma_semaphore, #tpu.memory_space<semaphore_mem>>
        tpu.enqueue_dma source(%arg4 : memref<1x128xf32, #tpu.memory_space<any>>) target(%arg11 : memref<1x128xf32, #tpu.memory_space<vmem>>) target_semaphore(%63 : memref<!tpu.dma_semaphore, #tpu.memory_space<semaphore_mem>>)
        tpu.wait_dma2 semaphore(%63 : memref<!tpu.dma_semaphore, #tpu.memory_space<semaphore_mem>>) src(%arg4 : memref<1x128xf32, #tpu.memory_space<any>>) dst(%arg11 : memref<1x128xf32, #tpu.memory_space<vmem>>)
        tpu.yield
      }) : () -> ()
      "tpu.region"() ({
        %63 = tpu.sem_alloc : memref<!tpu.dma_semaphore, #tpu.memory_space<semaphore_mem>>
        tpu.enqueue_dma source(%arg6 : memref<3x1x128xf32, #tpu.memory_space<any>>) target(%arg13 : memref<3x1x128xf32, #tpu.memory_space<vmem>>) target_semaphore(%63 : memref<!tpu.dma_semaphore, #tpu.memory_space<semaphore_mem>>)
        tpu.wait_dma2 semaphore(%63 : memref<!tpu.dma_semaphore, #tpu.memory_space<semaphore_mem>>) src(%arg6 : memref<3x1x128xf32, #tpu.memory_space<any>>) dst(%arg13 : memref<3x1x128xf32, #tpu.memory_space<vmem>>)
        tpu.yield
      }) : () -> ()
      "tpu.region"() ({
        %63 = tpu.sem_alloc : memref<!tpu.dma_semaphore, #tpu.memory_space<semaphore_mem>>
        tpu.enqueue_dma source(%arg7 : memref<128x128xbf16, #tpu.memory_space<any>>) target(%arg14 : memref<128x128xbf16, #tpu.memory_space<vmem>>) target_semaphore(%63 : memref<!tpu.dma_semaphore, #tpu.memory_space<semaphore_mem>>)
        tpu.wait_dma2 semaphore(%63 : memref<!tpu.dma_semaphore, #tpu.memory_space<semaphore_mem>>) src(%arg7 : memref<128x128xbf16, #tpu.memory_space<any>>) dst(%arg14 : memref<128x128xbf16, #tpu.memory_space<vmem>>)
        tpu.yield
      }) : () -> ()
      "tpu.region"() ({
        %63 = tpu.sem_alloc : memref<!tpu.dma_semaphore, #tpu.memory_space<semaphore_mem>>
        tpu.enqueue_dma source(%arg8 : memref<1x128xf32, #tpu.memory_space<any>>) target(%arg15 : memref<1x128xf32, #tpu.memory_space<vmem>>) target_semaphore(%63 : memref<!tpu.dma_semaphore, #tpu.memory_space<semaphore_mem>>)
        tpu.wait_dma2 semaphore(%63 : memref<!tpu.dma_semaphore, #tpu.memory_space<semaphore_mem>>) src(%arg8 : memref<1x128xf32, #tpu.memory_space<any>>) dst(%arg15 : memref<1x128xf32, #tpu.memory_space<vmem>>)
        tpu.yield
      }) : () -> ()
      "tpu.region"() ({
        %63 = tpu.sem_alloc : memref<!tpu.dma_semaphore, #tpu.memory_space<semaphore_mem>>
        tpu.enqueue_dma source(%arg5 : memref<3x128x128xbf16, #tpu.memory_space<any>>) target(%arg12 : memref<3x128x128xbf16, #tpu.memory_space<vmem>>) target_semaphore(%63 : memref<!tpu.dma_semaphore, #tpu.memory_space<semaphore_mem>>)
        tpu.wait_dma2 semaphore(%63 : memref<!tpu.dma_semaphore, #tpu.memory_space<semaphore_mem>>) src(%arg5 : memref<3x128x128xbf16, #tpu.memory_space<any>>) dst(%arg12 : memref<3x128x128xbf16, #tpu.memory_space<vmem>>)
        tpu.yield
      }) : () -> ()
    } else {
    }
    %c0 = arith.constant 0 : index
    %c0_1 = arith.constant 0 : index
    %3 = vector.load %arg2[%c0, %c0_1] : memref<16x128xbf16, #tpu.memory_space<vmem>>, vector<16x128xbf16>
    %c0_2 = arith.constant 0 : index
    %c0_3 = arith.constant 0 : index
    %4 = vector.load %arg10[%c0_2, %c0_3] : memref<128x128xbf16, #tpu.memory_space<vmem>>, vector<128x128xbf16>
    %cst = arith.constant dense<0.000000e+00> : vector<16x128xf32>
    %5 = tpu.matmul %3, %4, %cst {dimension_numbers = #tpu.dot_dimension_numbers<[1], [0], [0], [1], [0, 0, 1, 1], [], []>} : vector<16x128xbf16>, vector<128x128xbf16>, vector<16x128xf32> -> vector<16x128xf32>
    %c0_4 = arith.constant 0 : index
    %c0_5 = arith.constant 0 : index
    %6 = vector.load %arg11[%c0_4, %c0_5] : memref<1x128xf32, #tpu.memory_space<vmem>>, vector<1x128xf32>
    %7 = vector.broadcast %6 : vector<1x128xf32> to vector<16x128xf32>
    %8 = arith.addf %5, %7 : vector<16x128xf32>
    %c0_i32_6 = arith.constant 0 : i32
    %9 = arith.index_cast %c0_i32_6 : i32 to index
    %c0_7 = arith.constant 0 : index
    %c0_8 = arith.constant 0 : index
    %10 = vector.load %arg12[%9, %c0_7, %c0_8] : memref<3x128x128xbf16, #tpu.memory_space<vmem>>, vector<1x128x128xbf16>
    %11 = vector.shape_cast %10 : vector<1x128x128xbf16> to vector<128x128xbf16>
    %12 = arith.truncf %8 : vector<16x128xf32> to vector<16x128xbf16>
    %cst_9 = arith.constant dense<0.000000e+00> : vector<16x128xf32>
    %13 = tpu.matmul %12, %11, %cst_9 {dimension_numbers = #tpu.dot_dimension_numbers<[1], [0], [0], [1], [0, 0, 1, 1], [], []>} : vector<16x128xbf16>, vector<128x128xbf16>, vector<16x128xf32> -> vector<16x128xf32>
    %14 = arith.index_cast %c0_i32_6 : i32 to index
    %c0_10 = arith.constant 0 : index
    %c0_11 = arith.constant 0 : index
    %15 = vector.load %arg13[%14, %c0_10, %c0_11] : memref<3x1x128xf32, #tpu.memory_space<vmem>>, vector<1x1x128xf32>
    %16 = vector.shape_cast %15 : vector<1x1x128xf32> to vector<1x128xf32>
    %17 = vector.broadcast %16 : vector<1x128xf32> to vector<16x128xf32>
    %18 = arith.addf %13, %17 : vector<16x128xf32>
    %cst_12 = arith.constant 0.000000e+00 : f32
    %19 = vector.broadcast %cst_12 : f32 to vector<16x128xf32>
    %20 = arith.maximumf %18, %19 : vector<16x128xf32>
    %21 = arith.addf %20, %8 : vector<16x128xf32>
    %c1_i32 = arith.constant 1 : i32
    %22 = arith.index_cast %c1_i32 : i32 to index
    %c0_13 = arith.constant 0 : index
    %c0_14 = arith.constant 0 : index
    %23 = vector.load %arg12[%22, %c0_13, %c0_14] : memref<3x128x128xbf16, #tpu.memory_space<vmem>>, vector<1x128x128xbf16>
    %24 = vector.shape_cast %23 : vector<1x128x128xbf16> to vector<128x128xbf16>
    %25 = arith.truncf %21 : vector<16x128xf32> to vector<16x128xbf16>
    %cst_15 = arith.constant dense<0.000000e+00> : vector<16x128xf32>
    %26 = tpu.matmul %25, %24, %cst_15 {dimension_numbers = #tpu.dot_dimension_numbers<[1], [0], [0], [1], [0, 0, 1, 1], [], []>} : vector<16x128xbf16>, vector<128x128xbf16>, vector<16x128xf32> -> vector<16x128xf32>
    %27 = arith.index_cast %c1_i32 : i32 to index
    %c0_16 = arith.constant 0 : index
    %c0_17 = arith.constant 0 : index
    %28 = vector.load %arg13[%27, %c0_16, %c0_17] : memref<3x1x128xf32, #tpu.memory_space<vmem>>, vector<1x1x128xf32>
    %29 = vector.shape_cast %28 : vector<1x1x128xf32> to vector<1x128xf32>
    %30 = vector.broadcast %29 : vector<1x128xf32> to vector<16x128xf32>
    %31 = arith.addf %26, %30 : vector<16x128xf32>
    %cst_18 = arith.constant 0.000000e+00 : f32
    %32 = vector.broadcast %cst_18 : f32 to vector<16x128xf32>
    %33 = arith.maximumf %31, %32 : vector<16x128xf32>
    %34 = arith.addf %33, %21 : vector<16x128xf32>
    %c2_i32 = arith.constant 2 : i32
    %35 = arith.index_cast %c2_i32 : i32 to index
    %c0_19 = arith.constant 0 : index
    %c0_20 = arith.constant 0 : index
    %36 = vector.load %arg12[%35, %c0_19, %c0_20] : memref<3x128x128xbf16, #tpu.memory_space<vmem>>, vector<1x128x128xbf16>
    %37 = vector.shape_cast %36 : vector<1x128x128xbf16> to vector<128x128xbf16>
    %38 = arith.truncf %34 : vector<16x128xf32> to vector<16x128xbf16>
    %cst_21 = arith.constant dense<0.000000e+00> : vector<16x128xf32>
    %39 = tpu.matmul %38, %37, %cst_21 {dimension_numbers = #tpu.dot_dimension_numbers<[1], [0], [0], [1], [0, 0, 1, 1], [], []>} : vector<16x128xbf16>, vector<128x128xbf16>, vector<16x128xf32> -> vector<16x128xf32>
    %40 = arith.index_cast %c2_i32 : i32 to index
    %c0_22 = arith.constant 0 : index
    %c0_23 = arith.constant 0 : index
    %41 = vector.load %arg13[%40, %c0_22, %c0_23] : memref<3x1x128xf32, #tpu.memory_space<vmem>>, vector<1x1x128xf32>
    %42 = vector.shape_cast %41 : vector<1x1x128xf32> to vector<1x128xf32>
    %43 = vector.broadcast %42 : vector<1x128xf32> to vector<16x128xf32>
    %44 = arith.addf %39, %43 : vector<16x128xf32>
    %cst_24 = arith.constant 0.000000e+00 : f32
    %45 = vector.broadcast %cst_24 : f32 to vector<16x128xf32>
    %46 = arith.maximumf %44, %45 : vector<16x128xf32>
    %47 = arith.addf %46, %34 : vector<16x128xf32>
    %c3_i32 = arith.constant 3 : i32
    %48 = arith.truncf %47 : vector<16x128xf32> to vector<16x128xbf16>
    %c0_25 = arith.constant 0 : index
    %c0_26 = arith.constant 0 : index
    %49 = vector.load %arg14[%c0_25, %c0_26] : memref<128x128xbf16, #tpu.memory_space<vmem>>, vector<128x128xbf16>
    %cst_27 = arith.constant dense<0.000000e+00> : vector<16x128xf32>
    %50 = tpu.matmul %48, %49, %cst_27 {dimension_numbers = #tpu.dot_dimension_numbers<[1], [0], [0], [1], [0, 0, 1, 1], [], []>} : vector<16x128xbf16>, vector<128x128xbf16>, vector<16x128xf32> -> vector<16x128xf32>
    %c0_28 = arith.constant 0 : index
    %c0_29 = arith.constant 0 : index
    %51 = vector.load %arg15[%c0_28, %c0_29] : memref<1x128xf32, #tpu.memory_space<vmem>>, vector<1x128xf32>
    %52 = vector.broadcast %51 : vector<1x128xf32> to vector<16x128xf32>
    %53 = arith.addf %50, %52 : vector<16x128xf32>
    %54 = arith.mulf %53, %53 : vector<16x128xf32>
    %cst_30 = arith.constant dense<0.000000e+00> : vector<16xf32>
    %55 = vector.multi_reduction <add>, %54, %cst_30 [1] : vector<16x128xf32> to vector<16xf32>
    %56 = vector.shape_cast %55 : vector<16xf32> to vector<16x1xf32>
    %57 = math.rsqrt %56 : vector<16x1xf32>
    %cst_31 = arith.constant 1.41421354 : f32
    %58 = vector.broadcast %cst_31 : f32 to vector<16x1xf32>
    %59 = arith.mulf %57, %58 : vector<16x1xf32>
    %60 = vector.broadcast %59 : vector<16x1xf32> to vector<16x128xf32>
    %61 = arith.mulf %53, %60 : vector<16x128xf32>
    %c0_32 = arith.constant 0 : index
    %c0_33 = arith.constant 0 : index
    %62 = vector.load %arg9[%c0_32, %c0_33] : memref<16x128xf32, #tpu.memory_space<vmem>>, vector<16x128xf32>
    tpu.vector_store %arg9[%c0_32, %c0_33], %61 {strides = array<i32>} : memref<16x128xf32, #tpu.memory_space<vmem>>, vector<16x128xf32>,
    return
  }
  func.func @transform_0(%arg0: i32, %arg1: i32) -> (i32, i32) {
    %c2_i32 = arith.constant 2 : i32
    %0 = arith.muli %arg0, %c2_i32 : i32
    %1 = arith.addi %0, %arg1 : i32
    %c0_i32 = arith.constant 0 : i32
    %c0_i32_0 = arith.constant 0 : i32
    return %1, %c0_i32 : i32, i32
  }
  func.func @transform_7(%arg0: i32, %arg1: i32) -> (i32, i32) {
    %c2_i32 = arith.constant 2 : i32
    %0 = arith.muli %arg0, %c2_i32 : i32
    %1 = arith.addi %0, %arg1 : i32
    %c0_i32 = arith.constant 0 : i32
    %c0_i32_0 = arith.constant 0 : i32
    return %1, %c0_i32 : i32, i32
  }
}

</mosaic_0001>

<llo_original>
// kernel: tpu_custom_call.1
$region0: #{tpu_custom_call.1}
  #allocation0 [shape = 'u32[]', space=smem, size = 0x4, offset = 0x4, fixed_abs, tag = 'smem constant byte address 0x4 - core index']
  #allocation1 [shape = 'u32[144,128]{1,0:T(1,128)}', space=vmem, size = 0x12000, scoped, tag = 'internal scratch']
  #allocation2 [shape = 'bf16[128,128]{1,0:T(8,128)(2,1)}', space=vmem, size = 0x8000, scoped, tag = 'scratch operand']
  #allocation3 [shape = 'f32[1,128]{1,0:T(1,128)}', space=vmem, size = 0x200, scoped, tag = 'scratch operand']
  #allocation4 [shape = 'bf16[3,128,128]{2,1,0:T(8,128)(2,1)}', space=vmem, size = 0x18000, scoped, tag = 'scratch operand']
  #allocation5 [shape = 'f32[3,1,128]{2,1,0:T(1,128)}', space=vmem, size = 0x600, scoped, tag = 'scratch operand']
  #allocation6 [shape = 'bf16[128,128]{1,0:T(8,128)(2,1)}', space=vmem, size = 0x8000, scoped, tag = 'scratch operand']
  #allocation7 [shape = 'f32[1,128]{1,0:T(1,128)}', space=vmem, size = 0x200, scoped, tag = 'scratch operand']
  #allocation13 [shape = 's32[]', space=sflag, size = 0x4, offset = 0, fixed_abs, tag = 'sflag constant byte address 0x0 - dummy sync flag']
  #allocation14 [shape = 's32[]', space=sflag, size = 0x4, offset = 0, fixed_abs, tag = 'sflag constant byte address 0x0 - dummy sync flag']
  #allocation15 [shape = 'u32[]', space=smem, size = 0x4, offset = 0x44, fixed_abs, tag = 'smem constant byte address 0x44 - assertion arg 0']
  #allocation16 [shape = 'u32[]', space=smem, size = 0x4, offset = 0x48, fixed_abs, tag = 'smem constant byte address 0x48 - assertion arg 1']
  #allocation18 [shape = 's32[]', space=sflag, size = 0x4, offset = 0, fixed_abs, tag = 'sflag constant byte address 0x0 - dummy sync flag']
  #allocation20 [shape = 's32[]', space=sflag, size = 0x4, offset = 0, fixed_abs, tag = 'sflag constant byte address 0x0 - dummy sync flag']
  #allocation22 [shape = 's32[]', space=sflag, size = 0x4, offset = 0, fixed_abs, tag = 'sflag constant byte address 0x0 - dummy sync flag']
  #allocation23 [shape = 's32[]', space=sflag, size = 0x4, offset = 0, fixed_abs, tag = 'sflag constant byte address 0x0 - dummy sync flag']
  #allocation25 [shape = 's32[]', space=sflag, size = 0x4, offset = 0, fixed_abs, tag = 'sflag constant byte address 0x0 - dummy sync flag']
  #allocation27 [shape = 's32[]', space=sflag, size = 0x4, offset = 0, fixed_abs, tag = 'sflag constant byte address 0x0 - dummy sync flag']
  #allocation28 [shape = 's32[]', space=sflag, size = 0x4, offset = 0, fixed_abs, tag = 'sflag constant byte address 0x0 - dummy sync flag']
  %s0 = inlined_call_operand.hbm [shape: bf16[64,128], index: 0, kind: input, shape index: {}]
  %s1 = inlined_call_operand.hbm [shape: bf16[128,128], index: 1, kind: input, shape index: {}]
  %s2 = inlined_call_operand.vmem [shape: f32[1,128], index: 2, kind: input, shape index: {}]
  %s3 = inlined_call_operand.hbm [shape: bf16[3,128,128], index: 3, kind: input, shape index: {}]
  %s4 = inlined_call_operand.vmem [shape: f32[3,1,128], index: 4, kind: input, shape index: {}]
  %s5 = inlined_call_operand.hbm [shape: bf16[128,128], index: 5, kind: input, shape index: {}]
  %s6 = inlined_call_operand.vmem [shape: f32[1,128], index: 6, kind: input, shape index: {}]
  %s7 = inlined_call_operand.hbm [shape: f32[64,128], index: 7, kind: output, shape index: {}]
  %s8 = sld [smem:[#allocation0]]
  $region153: #{tpu_custom_call.1} parent=0
    _
  %s10 = ssub.s32 1, %s8
  %s11 = scalar_select 0, %s10, %s8
  $region1: #{tpu_custom_call.1} parent=0
    #allocation8 [shape = 'u8[8192]{0}', space=vmem, size = 0x2000, scoped, tag = 'input window, operand 0']
    #allocation9 [shape = 's32[2]{0}', space=sflag, size = 0x8, scoped, tag = 'scoped memory for tpu_custom_call.1']
    #allocation10 [shape = 's32[2]{0}', space=sflag, size = 0x8, scoped, tag = 'scoped memory for tpu_custom_call.1']
    #allocation11 [shape = 'u8[16384]{0}', space=vmem, size = 0x4000, scoped, tag = 'output window, operand 0']
    %12 = vsyncpa [#allocation9], 0
    %s13 = scalar_lea.sflag [#allocation9], 1
    %14 = vsyncpa %s13, 0
    %15 = vsyncpa [#allocation10], 0
    %s16 = scalar_lea.sflag [#allocation10], 1
    %17 = vsyncpa %s16, 0
    loop: start=0, step=1, limit=6
    $region2: #{tpu_custom_call.1} parent=1 // loop_pre_header
      _
    $region3: #{tpu_custom_call.1} parent=1 // loop_header
      %s19 = sphi 0, %s23
      %p20 = scmp.ge.s32.totalorder %s19, 6
      %s26 = sphi 0, %s38
      %s27 = sphi 0, %s34
      %s28 = sphi 0, %s26
      %s29 = sphi 0, %s27
      %s30 = sphi 0, %s28
      %s31 = sphi 0, %s29
      %s45 = sphi 0, %s47
      %s48 = sphi 0, %s45
      %s49 = sphi 0, %s48
      %s65 = sphi 0, %s49
      %s75 = sphi 0, %s77
      %s78 = sphi 0, %s75
      %s79 = sphi 0, %s78
      %s95 = sphi 0, %s79
    $region4: #{tpu_custom_call.1} parent=1 // loop_header_branch
      %22 = sbr.rel (%p20) target = $region8
    $region5: #{tpu_custom_call.1} parent=1 // loop_body
      %s24 = ssub.s32 %s19, 1
      %s25 = ssub.s32 %s19, 2
      %s32 = sadd.s32 1, %s27
      %p33 = scmp.ge.s32.totalorder %s32, 2
      %s34 = scalar_select %p33, 0, %s32
      %s35 = sadd.s32 1, %s26
      %s36 = scalar_select %p33, %s35, %s26
      %p37 = scmp.ge.s32.totalorder %s36, 2
      %s38 = scalar_select %p37, 0, %s36
      %s39 = smul.u32 %s26, 2
      %s40 = sadd.s32 %s39, %s27
      %s41 = smul.u32 %s38, 2
      %s42 = sadd.s32 %s41, %s34
      %s43 = ssub.s32 %s40, %s42
      %p44 = scmp.eq.s32.totalorder %s43, 0
      %s46 = sadd.s32 %s45, 1
      %s47 = scalar_select %p44, %s45, %s46
      %p50 = pneg %p44
      %p51 = scmp.eq.s32.totalorder %s19, 3
      %p52 = por %p50, %p51
      %p53 = scmp.ne.s32.totalorder %s45, %s48
      %p54 = scmp.eq.s32.totalorder %s19, 0
      %p55 = por %p53, %p54
      %p56 = scmp.ne.s32.totalorder %s45, %s48
      %p57 = scmp.eq.s32.totalorder %s24, 3
      %p58 = por %p56, %p57
      %p59 = scmp.ne.s32.totalorder %s48, %s49
      %p60 = scmp.eq.s32.totalorder %s24, 0
      %p61 = por %p59, %p60
      %p62 = scmp.ne.s32.totalorder %s48, %s49
      %p63 = scmp.eq.s32.totalorder %s25, 3
      %p64 = por %p62, %p63
      %p66 = scmp.ne.s32.totalorder %s49, %s65
      %p67 = scmp.eq.s32.totalorder %s25, 0
      %p68 = por %p66, %p67
      %s69 = smul.u32 %s26, 2
      %s70 = sadd.s32 %s69, %s27
      %s71 = smul.u32 %s38, 2
      %s72 = sadd.s32 %s71, %s34
      %s73 = ssub.s32 %s70, %s72
      %p74 = scmp.eq.s32.totalorder %s73, 0
      %s76 = sadd.s32 %s75, 1
      %s77 = scalar_select %p74, %s75, %s76
      %p80 = pneg %p74
      %p81 = scmp.eq.s32.totalorder %s19, 3
      %p82 = por %p80, %p81
      %p83 = scmp.ne.s32.totalorder %s75, %s78
      %p84 = scmp.eq.s32.totalorder %s19, 0
      %p85 = por %p83, %p84
      %p86 = scmp.ne.s32.totalorder %s75, %s78
      %p87 = scmp.eq.s32.totalorder %s24, 3
      %p88 = por %p86, %p87
      %p89 = scmp.ne.s32.totalorder %s78, %s79
      %p90 = scmp.eq.s32.totalorder %s24, 0
      %p91 = por %p89, %p90
      %p92 = scmp.ne.s32.totalorder %s78, %s79
      %p93 = scmp.eq.s32.totalorder %s25, 3
      %p94 = por %p92, %p93
      %p96 = scmp.ne.s32.totalorder %s79, %s95
      %p97 = scmp.eq.s32.totalorder %s25, 0
      %p98 = por %p96, %p97
      %p99 = scmp.le.s32.totalorder 1, %s19
      %p100 = scmp.lt.s32.totalorder %s19, 5
      %p101 = pnand %p99, %p100
      %p102 = pneg %p101
      // Predicated region
      $region9: #{tpu_custom_call.1} parent=5 // pred_check
        _
      $region10: #{tpu_custom_call.1} parent=5 // pred_check_branch
        %104 = sbr.rel (%p101) target = $region12
      $region11: #{tpu_custom_call.1} parent=5 // pred_region
        %s105 = ssub.s32 %s19, 1
      $region12: #{tpu_custom_call.1} parent=5 // pred_fallthru
        _
      %p106 = scmp.lt.s32.totalorder %s19, 4
      // Predicated region
      $region13: #{tpu_custom_call.1} parent=5 // pred_check
        %p107 = pneg %p106
      $region14: #{tpu_custom_call.1} parent=5 // pred_check_branch
        %109 = sbr.rel (%p107) target = $region16
      $region15: #{tpu_custom_call.1} parent=5 // pred_region
        // Predicated region
        $region17: #{tpu_custom_call.1} parent=15 // pred_check
          %p110 = pneg %p55
        $region18: #{tpu_custom_call.1} parent=15 // pred_check_branch
          %112 = sbr.rel (%p110) target = $region20
        $region19: #{tpu_custom_call.1} parent=15 // pred_region
          %s113 = sand.u32 %s45, 1
          %s114 = scalar_lea.sflag [#allocation9], %s113
          %s115 = sand.u32 %s45, 1
          %s116 = smul.addr %s115, 8
          %s117 = scalar_lea.vmem [#allocation8], %s116
          %s118 = smul.u32 %s26, 2
          %s119 = sadd.s32 %s118, %s27
          %s120 = smul.u32 2, %s119
          %s122 = ssub.s32 128, 128
          %123 = vsyncadd %s114, %s122
          %s124 = smul.addr %s120, 64
          %s125 = scalar_lea.hbm %s0, %s124
          %s126 = sshll.u32 %s117, 4
          %s127 = int_to_ptr.vmem [resolvable:$true] %s126
          %132 = dma.hbm_to_vmem [thread:$0]  %s125, 128, %s127, %s114, 64, 64, 4
        $region20: #{tpu_custom_call.1} parent=15 // pred_fallthru
          _
      $region16: #{tpu_custom_call.1} parent=5 // pred_fallthru
        _
      %p133 = scmp.le.s32.totalorder 1, %s19
      %p134 = scmp.lt.s32.totalorder %s19, 5
      %p135 = pnand %p133, %p134
      %p136 = pneg %p135
      // Predicated region
      $region21: #{tpu_custom_call.1} parent=5 // pred_check
        _
      $region22: #{tpu_custom_call.1} parent=5 // pred_check_branch
        %138 = sbr.rel (%p135) target = $region24
      $region23: #{tpu_custom_call.1} parent=5 // pred_region
        %s139 = ssub.s32 %s19, 1
        %s140 = sand.u32 %s48, 1
        %s141 = scalar_lea.sflag [#allocation9], %s140
        %s142 = sand.u32 %s48, 1
        %s143 = smul.addr %s142, 8
        %s144 = scalar_lea.vmem [#allocation8], %s143
        // Predicated region
        $region25: #{tpu_custom_call.1} parent=23 // pred_check
          %p145 = pneg %p61
        $region26: #{tpu_custom_call.1} parent=23 // pred_check_branch
          %147 = sbr.rel (%p145) target = $region28
        $region27: #{tpu_custom_call.1} parent=23 // pred_region
          %148 = dma.done %s141, 128
        $region28: #{tpu_custom_call.1} parent=23 // pred_fallthru
          _
        %s149 = sand.u32 %s48, 1
        %s150 = scalar_lea.sflag [#allocation9], %s149
        %s151 = sand.u32 %s48, 1
        %s152 = smul.addr %s151, 8
        %s153 = scalar_lea.vmem [#allocation8], %s152
        %p154 = pneg %p61
        %p155 = pneg %p58
        %p156 = pneg %p91
        %p157 = pneg %p88
        %s158 = sand.u32 %s78, 1
        %s159 = scalar_lea.sflag [#allocation10], %s158
        %s160 = sand.u32 %s78, 1
        %s161 = smul.addr %s160, 16
        %s162 = scalar_lea.vmem [#allocation11], %s161
        %s163 = smul.u32 %s28, 2
        %s164 = sadd.s32 %s163, %s29
        %s165 = smul.u32 2, %s164
        %s166 = smul.u32 %s28, 2
        %s167 = sadd.s32 %s166, %s29
        %s168 = smul.u32 2, %s167
        %p170 = scmp.eq.s32.totalorder %s29, 0
        // Predicated region
        $region29: #{tpu_custom_call.1} parent=23 // pred_check
          %p171 = pneg %p170
        $region30: #{tpu_custom_call.1} parent=23 // pred_check_branch
          %173 = sbr.rel (%p171) target = $region32
        $region31: #{tpu_custom_call.1} parent=23 // pred_region
          $region33: #{tpu_custom_call.1} parent=31
            #allocation12 [shape = 's32[1]{0}', space=sflag, size = 0x4, scoped, tag = 'scoped memory for tpu_custom_call.1']
            // Predicated region
            $region34: #{tpu_custom_call.1} parent=33 // pred_check
              _
            $region35: #{tpu_custom_call.1} parent=33 // pred_check_branch
              %175 = sbr.rel target = $region37
            $region36: #{tpu_custom_call.1} parent=33 // pred_region
              %176 = sst [smem:[#allocation15]] [#allocation14]
              %177 = sst [smem:[#allocation16]] [#allocation13]
            $region37: #{tpu_custom_call.1} parent=33 // pred_fallthru
              _
            %179 = shalt.err (0)
            %s181 = sshll.u32 [#allocation2], 4
            %s182 = int_to_ptr.vmem [resolvable:$true] %s181
            %184 = dma.hbm_to_vmem [thread:$0]  %s1, 1024, %s182, [#allocation12]
            %s185 = smul.u32 4, 16
            %s186 = smul.u32 %s185, 1
            %s187 = sshll.u32 %s186, 4
            %188 = dma.done [#allocation12], %s187
          $region38: #{tpu_custom_call.1} parent=31
            #allocation17 [shape = 's32[1]{0}', space=sflag, size = 0x4, scoped, tag = 'scoped memory for tpu_custom_call.1']
            %p190 = scmp.lt.u32.totalorder 1, 8
            %p191 = pneg %p190
            // Predicated region
            $region39: #{tpu_custom_call.1} parent=38 // pred_check
              _
            $region40: #{tpu_custom_call.1} parent=38 // pred_check_branch
              %193 = sbr.rel (%p190) target = $region42
            $region41: #{tpu_custom_call.1} parent=38 // pred_region
              %s209 = sand.u32 1, 7
              %p210 = scmp.eq.s32.totalorder %s209, 0
              %p211 = pneg %p210
              // Predicated region
              $region54: #{tpu_custom_call.1} parent=41 // pred_check
                _
              $region55: #{tpu_custom_call.1} parent=41 // pred_check_branch
                %213 = sbr.rel (%p210) target = $region57
              $region56: #{tpu_custom_call.1} parent=41 // pred_region
                %s214 = sand.u32 1, 7
                %s215 = ssub.s32 1, %s214
                %s216 = scalar_lea.vmem %s2, %s215
                %s217 = ssub.s32 1, %s214
                %s218 = scalar_lea.vmem [#allocation3], %s217
                %s219 = sshll.u32 1, %s214
                %s220 = ssub.s32 %s219, 1
                loop: start=0, step=1, limit=1
                $region58: #{tpu_custom_call.1} parent=56 // loop_pre_header
                  _
                $region59: #{tpu_custom_call.1} parent=56 // loop_header
                  %s222 = sphi 0, %s226
                  %p223 = scmp.ge.s32.totalorder %s222, 1
                  %s227 = sphi %s216, %s216
                  %s228 = sphi %s218, %s218
                $region60: #{tpu_custom_call.1} parent=56 // loop_header_branch
                  %225 = sbr.rel (%p223) target = $region64
                $region61: #{tpu_custom_call.1} parent=56 // loop_body
                  %v229 = vld [vmem:[%s227] sm:%s220]
                  %230 = vst [vmem:[%s228] sm:%s220] %v229
                $region62: #{tpu_custom_call.1} parent=56 // loop_footer
                  %s226 = sadd.s32 1, %s222
                $region63: #{tpu_custom_call.1} parent=56 // loop_footer_branch
                  %221 = sbr.rel target = $region59
                $region64: #{tpu_custom_call.1} parent=56 // loop_exit
                  _
              $region57: #{tpu_custom_call.1} parent=41 // pred_fallthru
                _
            $region42: #{tpu_custom_call.1} parent=38 // pred_fallthru
              _
            // Predicated region
            $region43: #{tpu_custom_call.1} parent=38 // pred_check
              %p194 = pneg %p190
            $region44: #{tpu_custom_call.1} parent=38 // pred_check_branch
              %196 = sbr.rel (%p194) target = $region46
            $region45: #{tpu_custom_call.1} parent=38 // pred_region
              %s197 = sshll.u32 1, 1
              %s198 = ssub.s32 %s197, 1
              loop: start=0, step=1, limit=1
              $region47: #{tpu_custom_call.1} parent=45 // loop_pre_header
                _
              $region48: #{tpu_custom_call.1} parent=45 // loop_header
                %s200 = sphi 0, %s204
                %p201 = scmp.ge.s32.totalorder %s200, 1
                %s205 = sphi %s2, %s2
                %s206 = sphi [#allocation3], [#allocation3]
              $region49: #{tpu_custom_call.1} parent=45 // loop_header_branch
                %203 = sbr.rel (%p201) target = $region53
              $region50: #{tpu_custom_call.1} parent=45 // loop_body
                %v207 = vld [vmem:[%s205] sm:%s198]
                %208 = vst [vmem:[%s206] sm:%s198] %v207
              $region51: #{tpu_custom_call.1} parent=45 // loop_footer
                %s204 = sadd.s32 1, %s200
              $region52: #{tpu_custom_call.1} parent=45 // loop_footer_branch
                %199 = sbr.rel target = $region48
              $region53: #{tpu_custom_call.1} parent=45 // loop_exit
                _
            $region46: #{tpu_custom_call.1} parent=38 // pred_fallthru
              _
            // Predicated region
            $region65: #{tpu_custom_call.1} parent=38 // pred_check
              _
            $region66: #{tpu_custom_call.1} parent=38 // pred_check_branch
              %233 = sbr.rel (0) target = $region68
            $region67: #{tpu_custom_call.1} parent=38 // pred_region
              %234 = vsyncadd [#allocation17], 16
            $region68: #{tpu_custom_call.1} parent=38 // pred_fallthru
              _
            %s235 = smul.u32 1, 1
            %s236 = sshll.u32 %s235, 4
            %237 = dma.done [#allocation17], %s236
          $region69: #{tpu_custom_call.1} parent=31
            #allocation19 [shape = 's32[1]{0}', space=sflag, size = 0x4, scoped, tag = 'scoped memory for tpu_custom_call.1']
            %p239 = scmp.lt.u32.totalorder 3, 8
            %p240 = pneg %p239
            // Predicated region
            $region70: #{tpu_custom_call.1} parent=69 // pred_check
              _
            $region71: #{tpu_custom_call.1} parent=69 // pred_check_branch
              %242 = sbr.rel (%p239) target = $region73
            $region72: #{tpu_custom_call.1} parent=69 // pred_region
              %s258 = sand.u32 3, 7
              %p259 = scmp.eq.s32.totalorder %s258, 0
              %p260 = pneg %p259
              // Predicated region
              $region85: #{tpu_custom_call.1} parent=72 // pred_check
                _
              $region86: #{tpu_custom_call.1} parent=72 // pred_check_branch
                %262 = sbr.rel (%p259) target = $region88
              $region87: #{tpu_custom_call.1} parent=72 // pred_region
                %s263 = sand.u32 3, 7
                %s264 = ssub.s32 3, %s263
                %s265 = scalar_lea.vmem %s4, %s264
                %s266 = ssub.s32 3, %s263
                %s267 = scalar_lea.vmem [#allocation5], %s266
                %s268 = sshll.u32 1, %s263
                %s269 = ssub.s32 %s268, 1
                loop: start=0, step=1, limit=1
                $region89: #{tpu_custom_call.1} parent=87 // loop_pre_header
                  _
                $region90: #{tpu_custom_call.1} parent=87 // loop_header
                  %s271 = sphi 0, %s275
                  %p272 = scmp.ge.s32.totalorder %s271, 1
                  %s276 = sphi %s265, %s265
                  %s277 = sphi %s267, %s267
                $region91: #{tpu_custom_call.1} parent=87 // loop_header_branch
                  %274 = sbr.rel (%p272) target = $region95
                $region92: #{tpu_custom_call.1} parent=87 // loop_body
                  %v278 = vld [vmem:[%s276] sm:%s269]
                  %279 = vst [vmem:[%s277] sm:%s269] %v278
                $region93: #{tpu_custom_call.1} parent=87 // loop_footer
                  %s275 = sadd.s32 1, %s271
                $region94: #{tpu_custom_call.1} parent=87 // loop_footer_branch
                  %270 = sbr.rel target = $region90
                $region95: #{tpu_custom_call.1} parent=87 // loop_exit
                  _
              $region88: #{tpu_custom_call.1} parent=72 // pred_fallthru
                _
            $region73: #{tpu_custom_call.1} parent=69 // pred_fallthru
              _
            // Predicated region
            $region74: #{tpu_custom_call.1} parent=69 // pred_check
              %p243 = pneg %p239
            $region75: #{tpu_custom_call.1} parent=69 // pred_check_branch
              %245 = sbr.rel (%p243) target = $region77
            $region76: #{tpu_custom_call.1} parent=69 // pred_region
              %s246 = sshll.u32 1, 3
              %s247 = ssub.s32 %s246, 1
              loop: start=0, step=1, limit=1
              $region78: #{tpu_custom_call.1} parent=76 // loop_pre_header
                _
              $region79: #{tpu_custom_call.1} parent=76 // loop_header
                %s249 = sphi 0, %s253
                %p250 = scmp.ge.s32.totalorder %s249, 1
                %s254 = sphi %s4, %s4
                %s255 = sphi [#allocation5], [#allocation5]
              $region80: #{tpu_custom_call.1} parent=76 // loop_header_branch
                %252 = sbr.rel (%p250) target = $region84
              $region81: #{tpu_custom_call.1} parent=76 // loop_body
                %v256 = vld [vmem:[%s254] sm:%s247]
                %257 = vst [vmem:[%s255] sm:%s247] %v256
              $region82: #{tpu_custom_call.1} parent=76 // loop_footer
                %s253 = sadd.s32 1, %s249
              $region83: #{tpu_custom_call.1} parent=76 // loop_footer_branch
                %248 = sbr.rel target = $region79
              $region84: #{tpu_custom_call.1} parent=76 // loop_exit
                _
            $region77: #{tpu_custom_call.1} parent=69 // pred_fallthru
              _
            // Predicated region
            $region96: #{tpu_custom_call.1} parent=69 // pred_check
              _
            $region97: #{tpu_custom_call.1} parent=69 // pred_check_branch
              %282 = sbr.rel (0) target = $region99
            $region98: #{tpu_custom_call.1} parent=69 // pred_region
              %283 = vsyncadd [#allocation19], 48
            $region99: #{tpu_custom_call.1} parent=69 // pred_fallthru
              _
            %s284 = smul.u32 3, 1
            %s285 = smul.u32 %s284, 1
            %s286 = sshll.u32 %s285, 4
            %287 = dma.done [#allocation19], %s286
          $region100: #{tpu_custom_call.1} parent=31
            #allocation21 [shape = 's32[1]{0}', space=sflag, size = 0x4, scoped, tag = 'scoped memory for tpu_custom_call.1']
            // Predicated region
            $region101: #{tpu_custom_call.1} parent=100 // pred_check
              _
            $region102: #{tpu_custom_call.1} parent=100 // pred_check_branch
              %289 = sbr.rel target = $region104
            $region103: #{tpu_custom_call.1} parent=100 // pred_region
              %290 = sst [smem:[#allocation15]] [#allocation23]
              %291 = sst [smem:[#allocation16]] [#allocation22]
            $region104: #{tpu_custom_call.1} parent=100 // pred_fallthru
              _
            %293 = shalt.err (0)
            %s295 = sshll.u32 [#allocation6], 4
            %s296 = int_to_ptr.vmem [resolvable:$true] %s295
            %298 = dma.hbm_to_vmem [thread:$0]  %s5, 1024, %s296, [#allocation21]
            %s299 = smul.u32 4, 16
            %s300 = smul.u32 %s299, 1
            %s301 = sshll.u32 %s300, 4
            %302 = dma.done [#allocation21], %s301
          $region105: #{tpu_custom_call.1} parent=31
            #allocation24 [shape = 's32[1]{0}', space=sflag, size = 0x4, scoped, tag = 'scoped memory for tpu_custom_call.1']
            %p304 = scmp.lt.u32.totalorder 1, 8
            %p305 = pneg %p304
            // Predicated region
            $region106: #{tpu_custom_call.1} parent=105 // pred_check
              _
            $region107: #{tpu_custom_call.1} parent=105 // pred_check_branch
              %307 = sbr.rel (%p304) target = $region109
            $region108: #{tpu_custom_call.1} parent=105 // pred_region
              %s323 = sand.u32 1, 7
              %p324 = scmp.eq.s32.totalorder %s323, 0
              %p325 = pneg %p324
              // Predicated region
              $region121: #{tpu_custom_call.1} parent=108 // pred_check
                _
              $region122: #{tpu_custom_call.1} parent=108 // pred_check_branch
                %327 = sbr.rel (%p324) target = $region124
              $region123: #{tpu_custom_call.1} parent=108 // pred_region
                %s328 = sand.u32 1, 7
                %s329 = ssub.s32 1, %s328
                %s330 = scalar_lea.vmem %s6, %s329
                %s331 = ssub.s32 1, %s328
                %s332 = scalar_lea.vmem [#allocation7], %s331
                %s333 = sshll.u32 1, %s328
                %s334 = ssub.s32 %s333, 1
                loop: start=0, step=1, limit=1
                $region125: #{tpu_custom_call.1} parent=123 // loop_pre_header
                  _
                $region126: #{tpu_custom_call.1} parent=123 // loop_header
                  %s336 = sphi 0, %s340
                  %p337 = scmp.ge.s32.totalorder %s336, 1
                  %s341 = sphi %s330, %s330
                  %s342 = sphi %s332, %s332
                $region127: #{tpu_custom_call.1} parent=123 // loop_header_branch
                  %339 = sbr.rel (%p337) target = $region131
                $region128: #{tpu_custom_call.1} parent=123 // loop_body
                  %v343 = vld [vmem:[%s341] sm:%s334]
                  %344 = vst [vmem:[%s342] sm:%s334] %v343
                $region129: #{tpu_custom_call.1} parent=123 // loop_footer
                  %s340 = sadd.s32 1, %s336
                $region130: #{tpu_custom_call.1} parent=123 // loop_footer_branch
                  %335 = sbr.rel target = $region126
                $region131: #{tpu_custom_call.1} parent=123 // loop_exit
                  _
              $region124: #{tpu_custom_call.1} parent=108 // pred_fallthru
                _
            $region109: #{tpu_custom_call.1} parent=105 // pred_fallthru
              _
            // Predicated region
            $region110: #{tpu_custom_call.1} parent=105 // pred_check
              %p308 = pneg %p304
            $region111: #{tpu_custom_call.1} parent=105 // pred_check_branch
              %310 = sbr.rel (%p308) target = $region113
            $region112: #{tpu_custom_call.1} parent=105 // pred_region
              %s311 = sshll.u32 1, 1
              %s312 = ssub.s32 %s311, 1
              loop: start=0, step=1, limit=1
              $region114: #{tpu_custom_call.1} parent=112 // loop_pre_header
                _
              $region115: #{tpu_custom_call.1} parent=112 // loop_header
                %s314 = sphi 0, %s318
                %p315 = scmp.ge.s32.totalorder %s314, 1
                %s319 = sphi %s6, %s6
                %s320 = sphi [#allocation7], [#allocation7]
              $region116: #{tpu_custom_call.1} parent=112 // loop_header_branch
                %317 = sbr.rel (%p315) target = $region120
              $region117: #{tpu_custom_call.1} parent=112 // loop_body
                %v321 = vld [vmem:[%s319] sm:%s312]
                %322 = vst [vmem:[%s320] sm:%s312] %v321
              $region118: #{tpu_custom_call.1} parent=112 // loop_footer
                %s318 = sadd.s32 1, %s314
              $region119: #{tpu_custom_call.1} parent=112 // loop_footer_branch
                %313 = sbr.rel target = $region115
              $region120: #{tpu_custom_call.1} parent=112 // loop_exit
                _
            $region113: #{tpu_custom_call.1} parent=105 // pred_fallthru
              _
            // Predicated region
            $region132: #{tpu_custom_call.1} parent=105 // pred_check
              _
            $region133: #{tpu_custom_call.1} parent=105 // pred_check_branch
              %347 = sbr.rel (0) target = $region135
            $region134: #{tpu_custom_call.1} parent=105 // pred_region
              %348 = vsyncadd [#allocation24], 16
            $region135: #{tpu_custom_call.1} parent=105 // pred_fallthru
              _
            %s349 = smul.u32 1, 1
            %s350 = sshll.u32 %s349, 4
            %351 = dma.done [#allocation24], %s350
          $region136: #{tpu_custom_call.1} parent=31
            #allocation26 [shape = 's32[1]{0}', space=sflag, size = 0x4, scoped, tag = 'scoped memory for tpu_custom_call.1']
            // Predicated region
            $region137: #{tpu_custom_call.1} parent=136 // pred_check
              _
            $region138: #{tpu_custom_call.1} parent=136 // pred_check_branch
              %353 = sbr.rel target = $region140
            $region139: #{tpu_custom_call.1} parent=136 // pred_region
              %354 = sst [smem:[#allocation15]] [#allocation28]
              %355 = sst [smem:[#allocation16]] [#allocation27]
            $region140: #{tpu_custom_call.1} parent=136 // pred_fallthru
              _
            %357 = shalt.err (0)
            %s359 = sshll.u32 [#allocation4], 4
            %s360 = int_to_ptr.vmem [resolvable:$true] %s359
            %362 = dma.hbm_to_vmem [thread:$0]  %s3, 3072, %s360, [#allocation26]
            %s363 = smul.u32 4, 3
            %s364 = smul.u32 %s363, 16
            %s365 = smul.u32 %s364, 1
            %s366 = sshll.u32 %s365, 4
            %367 = dma.done [#allocation26], %s366
        $region32: #{tpu_custom_call.1} parent=23 // pred_fallthru
          _
        %v368 = vld [vmem:[%s144] sm:$0xf]
        %v369 = vld [vmem:[%s144 + $0x4] sm:$0xf]
        %v370 = vld [vmem:[#allocation2] sm:$0xf]
        %v371 = vld [vmem:[#allocation2 + $0x4] sm:$0xf]
        %v372 = vld [vmem:[#allocation2 + $0x8] sm:$0xf]
        %v373 = vld [vmem:[#allocation2 + $0xc] sm:$0xf]
        %v374 = vld [vmem:[#allocation2 + $0x10] sm:$0xf]
        %v375 = vld [vmem:[#allocation2 + $0x14] sm:$0xf]
        %v376 = vld [vmem:[#allocation2 + $0x18] sm:$0xf]
        %v377 = vld [vmem:[#allocation2 + $0x1c] sm:$0xf]
        %v378 = vld [vmem:[#allocation2 + $0x20] sm:$0xf]
        %v379 = vld [vmem:[#allocation2 + $0x24] sm:$0xf]
        %v380 = vld [vmem:[#allocation2 + $0x28] sm:$0xf]
        %v381 = vld [vmem:[#allocation2 + $0x2c] sm:$0xf]
        %v382 = vld [vmem:[#allocation2 + $0x30] sm:$0xf]
        %v383 = vld [vmem:[#allocation2 + $0x34] sm:$0xf]
        %v384 = vld [vmem:[#allocation2 + $0x38] sm:$0xf]
        %v385 = vld [vmem:[#allocation2 + $0x3c] sm:$0xf]
        %v386 = vld [vmem:[#allocation3] sm:$0x1]
        %v388 = vlaneseq
        %v389 = vshrl.u32 %v388, 7
        %v390 = vsub.s32 0, %v389
        %v391 = vrot.slane %v386, %v390
        %v395 = vunpack.c.l.b16 %v368
        %v396 = vunpack.c.l.b16 %v369
        %v397 = vpack.c.b16 %v396, %v395
        %v415 = vunpack.c.l.b16 %v370
        %v416 = vunpack.c.l.b16 %v371
        %v417 = vunpack.c.l.b16 %v372
        %v418 = vunpack.c.l.b16 %v373
        %v419 = vunpack.c.l.b16 %v374
        %v420 = vunpack.c.l.b16 %v375
        %v421 = vunpack.c.l.b16 %v376
        %v422 = vunpack.c.l.b16 %v377
        %v423 = vunpack.c.l.b16 %v378
        %v424 = vunpack.c.l.b16 %v379
        %v425 = vunpack.c.l.b16 %v380
        %v426 = vunpack.c.l.b16 %v381
        %v427 = vunpack.c.l.b16 %v382
        %v428 = vunpack.c.l.b16 %v383
        %v429 = vunpack.c.l.b16 %v384
        %v430 = vunpack.c.l.b16 %v385
        %v431 = vpack.c.b16 %v416, %v415
        %v432 = vpack.c.b16 %v418, %v417
        %v433 = vpack.c.b16 %v420, %v419
        %v434 = vpack.c.b16 %v422, %v421
        %v435 = vpack.c.b16 %v424, %v423
        %v436 = vpack.c.b16 %v426, %v425
        %v437 = vpack.c.b16 %v428, %v427
        %v438 = vpack.c.b16 %v430, %v429
        %447 = vmatprep.subr.bf16.mxu0 0
        %448 = vmatpush1.bf16.msra.mxu0 %v438
        %449 = vmatprep.subr.bf16.mxu0 0
        %450 = vmatpush1.bf16.msra.mxu0 %v437
        %451 = vmatprep.subr.bf16.mxu0 0
        %452 = vmatpush1.bf16.msra.mxu0 %v436
        %453 = vmatprep.subr.bf16.mxu0 0
        %454 = vmatpush1.bf16.msra.mxu0 %v435
        %455 = vmatprep.subr.bf16.mxu0 0
        %456 = vmatpush1.bf16.msra.mxu0 %v434
        %457 = vmatprep.subr.bf16.mxu0 0
        %458 = vmatpush1.bf16.msra.mxu0 %v433
        %459 = vmatprep.subr.bf16.mxu0 0
        %460 = vmatpush1.bf16.msra.mxu0 %v432
        %461 = vmatprep.subr.bf16.mxu0 0
        %462 = vmatpush1.bf16.msra.mxu0 %v431
        %463 = vmatprep.subr.bf16.mxu0 0
        %464 = vmatpush2.bf16.msra.mxu0 0
        %465 = vmatprep.subr.bf16.mxu0 0
        %466 = vmatpush2.bf16.msra.mxu0 0
        %467 = vmatprep.subr.bf16.mxu0 0
        %468 = vmatpush2.bf16.msra.mxu0 0
        %469 = vmatprep.subr.bf16.mxu0 0
        %470 = vmatpush2.bf16.msra.mxu0 0
        %471 = vmatprep.subr.bf16.mxu0 0
        %472 = vmatpush2.bf16.msra.mxu0 0
        %473 = vmatprep.subr.bf16.mxu0 0
        %474 = vmatpush2.bf16.msra.mxu0 0
        %475 = vmatprep.subr.bf16.mxu0 0
        %476 = vmatpush2.bf16.msra.mxu0 0
        %477 = vmatprep.subr.bf16.mxu0 0
        %478 = vmatpush2.bf16.msra.mxu0 0
        %479 = vmatprep.mubr.bf16.mxu0 0
        %480 = vmatmul.mubr.bf16.gmra.mxu0 %v397
        %v481 = vpop.f32.mrf.mxu0
        %v482 = vadd.f32 %v391, %v481
        %v483 = vpop.f32.mrf.mxu0
        %v484 = vpop.f32.mrf.mxu0
        %v485 = vadd.f32 %v391, %v484
        %v486 = vpop.f32.mrf.mxu0
        %487 = vdwg.mxu0
        %v488 = vld [vmem:[#allocation4] sm:$0xf]
        %v489 = vld [vmem:[#allocation4 + $0x4] sm:$0xf]
        %v490 = vld [vmem:[#allocation4 + $0x8] sm:$0xf]
        %v491 = vld [vmem:[#allocation4 + $0xc] sm:$0xf]
        %v492 = vld [vmem:[#allocation4 + $0x10] sm:$0xf]
        %v493 = vld [vmem:[#allocation4 + $0x14] sm:$0xf]
        %v494 = vld [vmem:[#allocation4 + $0x18] sm:$0xf]
        %v495 = vld [vmem:[#allocation4 + $0x1c] sm:$0xf]
        %v496 = vld [vmem:[#allocation4 + $0x20] sm:$0xf]
        %v497 = vld [vmem:[#allocation4 + $0x24] sm:$0xf]
        %v498 = vld [vmem:[#allocation4 + $0x28] sm:$0xf]
        %v499 = vld [vmem:[#allocation4 + $0x2c] sm:$0xf]
        %v500 = vld [vmem:[#allocation4 + $0x30] sm:$0xf]
        %v501 = vld [vmem:[#allocation4 + $0x34] sm:$0xf]
        %v502 = vld [vmem:[#allocation4 + $0x38] sm:$0xf]
        %v503 = vld [vmem:[#allocation4 + $0x3c] sm:$0xf]
        %v504 = vpack.c.bf16 %v485, %v482
        %v505 = vld [vmem:[#allocation5] sm:$0x1]
        %v507 = vlaneseq
        %v508 = vshrl.u32 %v507, 7
        %v509 = vsub.s32 0, %v508
        %v510 = vrot.slane %v505, %v509
        %v528 = vunpack.c.l.b16 %v488
        %v529 = vunpack.c.l.b16 %v489
        %v530 = vunpack.c.l.b16 %v490
        %v531 = vunpack.c.l.b16 %v491
        %v532 = vunpack.c.l.b16 %v492
        %v533 = vunpack.c.l.b16 %v493
        %v534 = vunpack.c.l.b16 %v494
        %v535 = vunpack.c.l.b16 %v495
        %v536 = vunpack.c.l.b16 %v496
        %v537 = vunpack.c.l.b16 %v497
        %v538 = vunpack.c.l.b16 %v498
        %v539 = vunpack.c.l.b16 %v499
        %v540 = vunpack.c.l.b16 %v500
        %v541 = vunpack.c.l.b16 %v501
        %v542 = vunpack.c.l.b16 %v502
        %v543 = vunpack.c.l.b16 %v503
        %v544 = vpack.c.b16 %v529, %v528
        %v545 = vpack.c.b16 %v531, %v530
        %v546 = vpack.c.b16 %v533, %v532
        %v547 = vpack.c.b16 %v535, %v534
        %v548 = vpack.c.b16 %v537, %v536
        %v549 = vpack.c.b16 %v539, %v538
        %v550 = vpack.c.b16 %v541, %v540
        %v551 = vpack.c.b16 %v543, %v542
        %560 = vmatprep.subr.bf16.mxu0 0
        %561 = vmatpush1.bf16.msra.mxu0 %v551
        %562 = vmatprep.subr.bf16.mxu0 0
        %563 = vmatpush1.bf16.msra.mxu0 %v550
        %564 = vmatprep.subr.bf16.mxu0 0
        %565 = vmatpush1.bf16.msra.mxu0 %v549
        %566 = vmatprep.subr.bf16.mxu0 0
        %567 = vmatpush1.bf16.msra.mxu0 %v548
        %568 = vmatprep.subr.bf16.mxu0 0
        %569 = vmatpush1.bf16.msra.mxu0 %v547
        %570 = vmatprep.subr.bf16.mxu0 0
        %571 = vmatpush1.bf16.msra.mxu0 %v546
        %572 = vmatprep.subr.bf16.mxu0 0
        %573 = vmatpush1.bf16.msra.mxu0 %v545
        %574 = vmatprep.subr.bf16.mxu0 0
        %575 = vmatpush1.bf16.msra.mxu0 %v544
        %576 = vmatprep.subr.bf16.mxu0 0
        %577 = vmatpush2.bf16.msra.mxu0 0
        %578 = vmatprep.subr.bf16.mxu0 0
        %579 = vmatpush2.bf16.msra.mxu0 0
        %580 = vmatprep.subr.bf16.mxu0 0
        %581 = vmatpush2.bf16.msra.mxu0 0
        %582 = vmatprep.subr.bf16.mxu0 0
        %583 = vmatpush2.bf16.msra.mxu0 0
        %584 = vmatprep.subr.bf16.mxu0 0
        %585 = vmatpush2.bf16.msra.mxu0 0
        %586 = vmatprep.subr.bf16.mxu0 0
        %587 = vmatpush2.bf16.msra.mxu0 0
        %588 = vmatprep.subr.bf16.mxu0 0
        %589 = vmatpush2.bf16.msra.mxu0 0
        %590 = vmatprep.subr.bf16.mxu0 0
        %591 = vmatpush2.bf16.msra.mxu0 0
        %592 = vmatprep.mubr.bf16.mxu0 0
        %593 = vmatmul.mubr.bf16.gmra.mxu0 %v504
        %v594 = vpop.f32.mrf.mxu0
        %v595 = vadd.f32 %v510, %v594
        %v596 = vpop.f32.mrf.mxu0
        %v597 = vpop.f32.mrf.mxu0
        %v598 = vadd.f32 %v510, %v597
        %v599 = vpop.f32.mrf.mxu0
        %600 = vdwg.mxu0
        %v601 = vmax.f32 %v595, 0.0
        %v602 = vmax.f32 %v598, 0.0
        %v603 = vadd.f32 %v601, %v482
        %v604 = vadd.f32 %v602, %v485
        %s605 = scalar_lea.vmem [#allocation4], 64
        %v606 = vld [vmem:[%s605] sm:$0xf]
        %v607 = vld [vmem:[%s605 + $0x4] sm:$0xf]
        %v608 = vld [vmem:[%s605 + $0x8] sm:$0xf]
        %v609 = vld [vmem:[%s605 + $0xc] sm:$0xf]
        %v610 = vld [vmem:[%s605 + $0x10] sm:$0xf]
        %v611 = vld [vmem:[%s605 + $0x14] sm:$0xf]
        %v612 = vld [vmem:[%s605 + $0x18] sm:$0xf]
        %v613 = vld [vmem:[%s605 + $0x1c] sm:$0xf]
        %v614 = vld [vmem:[%s605 + $0x20] sm:$0xf]
        %v615 = vld [vmem:[%s605 + $0x24] sm:$0xf]
        %v616 = vld [vmem:[%s605 + $0x28] sm:$0xf]
        %v617 = vld [vmem:[%s605 + $0x2c] sm:$0xf]
        %v618 = vld [vmem:[%s605 + $0x30] sm:$0xf]
        %v619 = vld [vmem:[%s605 + $0x34] sm:$0xf]
        %v620 = vld [vmem:[%s605 + $0x38] sm:$0xf]
        %v621 = vld [vmem:[%s605 + $0x3c] sm:$0xf]
        %v622 = vpack.c.bf16 %v604, %v603
        %s623 = scalar_lea.vmem [#allocation5], 1
        %v624 = vld [vmem:[%s623] sm:$0x1]
        %v626 = vlaneseq
        %v627 = vshrl.u32 %v626, 7
        %v628 = vsub.s32 0, %v627
        %v629 = vrot.slane %v624, %v628
        %v647 = vunpack.c.l.b16 %v606
        %v648 = vunpack.c.l.b16 %v607
        %v649 = vunpack.c.l.b16 %v608
        %v650 = vunpack.c.l.b16 %v609
        %v651 = vunpack.c.l.b16 %v610
        %v652 = vunpack.c.l.b16 %v611
        %v653 = vunpack.c.l.b16 %v612
        %v654 = vunpack.c.l.b16 %v613
        %v655 = vunpack.c.l.b16 %v614
        %v656 = vunpack.c.l.b16 %v615
        %v657 = vunpack.c.l.b16 %v616
        %v658 = vunpack.c.l.b16 %v617
        %v659 = vunpack.c.l.b16 %v618
        %v660 = vunpack.c.l.b16 %v619
        %v661 = vunpack.c.l.b16 %v620
        %v662 = vunpack.c.l.b16 %v621
        %v663 = vpack.c.b16 %v648, %v647
        %v664 = vpack.c.b16 %v650, %v649
        %v665 = vpack.c.b16 %v652, %v651
        %v666 = vpack.c.b16 %v654, %v653
        %v667 = vpack.c.b16 %v656, %v655
        %v668 = vpack.c.b16 %v658, %v657
        %v669 = vpack.c.b16 %v660, %v659
        %v670 = vpack.c.b16 %v662, %v661
        %679 = vmatprep.subr.bf16.mxu0 0
        %680 = vmatpush1.bf16.msra.mxu0 %v670
        %681 = vmatprep.subr.bf16.mxu0 0
        %682 = vmatpush1.bf16.msra.mxu0 %v669
        %683 = vmatprep.subr.bf16.mxu0 0
        %684 = vmatpush1.bf16.msra.mxu0 %v668
        %685 = vmatprep.subr.bf16.mxu0 0
        %686 = vmatpush1.bf16.msra.mxu0 %v667
        %687 = vmatprep.subr.bf16.mxu0 0
        %688 = vmatpush1.bf16.msra.mxu0 %v666
        %689 = vmatprep.subr.bf16.mxu0 0
        %690 = vmatpush1.bf16.msra.mxu0 %v665
        %691 = vmatprep.subr.bf16.mxu0 0
        %692 = vmatpush1.bf16.msra.mxu0 %v664
        %693 = vmatprep.subr.bf16.mxu0 0
        %694 = vmatpush1.bf16.msra.mxu0 %v663
        %695 = vmatprep.subr.bf16.mxu0 0
        %696 = vmatpush2.bf16.msra.mxu0 0
        %697 = vmatprep.subr.bf16.mxu0 0
        %698 = vmatpush2.bf16.msra.mxu0 0
        %699 = vmatprep.subr.bf16.mxu0 0
        %700 = vmatpush2.bf16.msra.mxu0 0
        %701 = vmatprep.subr.bf16.mxu0 0
        %702 = vmatpush2.bf16.msra.mxu0 0
        %703 = vmatprep.subr.bf16.mxu0 0
        %704 = vmatpush2.bf16.msra.mxu0 0
        %705 = vmatprep.subr.bf16.mxu0 0
        %706 = vmatpush2.bf16.msra.mxu0 0
        %707 = vmatprep.subr.bf16.mxu0 0
        %708 = vmatpush2.bf16.msra.mxu0 0
        %709 = vmatprep.subr.bf16.mxu0 0
        %710 = vmatpush2.bf16.msra.mxu0 0
        %711 = vmatprep.mubr.bf16.mxu0 0
        %712 = vmatmul.mubr.bf16.gmra.mxu0 %v622
        %v713 = vpop.f32.mrf.mxu0
        %v714 = vadd.f32 %v629, %v713
        %v715 = vpop.f32.mrf.mxu0
        %v716 = vpop.f32.mrf.mxu0
        %v717 = vadd.f32 %v629, %v716
        %v718 = vpop.f32.mrf.mxu0
        %719 = vdwg.mxu0
        %v720 = vmax.f32 %v714, 0.0
        %v721 = vmax.f32 %v717, 0.0
        %v722 = vadd.f32 %v720, %v603
        %v723 = vadd.f32 %v721, %v604
        %s724 = scalar_lea.vmem [#allocation4], 128
        %v725 = vld [vmem:[%s724] sm:$0xf]
        %v726 = vld [vmem:[%s724 + $0x4] sm:$0xf]
        %v727 = vld [vmem:[%s724 + $0x8] sm:$0xf]
        %v728 = vld [vmem:[%s724 + $0xc] sm:$0xf]
        %v729 = vld [vmem:[%s724 + $0x10] sm:$0xf]
        %v730 = vld [vmem:[%s724 + $0x14] sm:$0xf]
        %v731 = vld [vmem:[%s724 + $0x18] sm:$0xf]
        %v732 = vld [vmem:[%s724 + $0x1c] sm:$0xf]
        %v733 = vld [vmem:[%s724 + $0x20] sm:$0xf]
        %v734 = vld [vmem:[%s724 + $0x24] sm:$0xf]
        %v735 = vld [vmem:[%s724 + $0x28] sm:$0xf]
        %v736 = vld [vmem:[%s724 + $0x2c] sm:$0xf]
        %v737 = vld [vmem:[%s724 + $0x30] sm:$0xf]
        %v738 = vld [vmem:[%s724 + $0x34] sm:$0xf]
        %v739 = vld [vmem:[%s724 + $0x38] sm:$0xf]
        %v740 = vld [vmem:[%s724 + $0x3c] sm:$0xf]
        %v741 = vpack.c.bf16 %v723, %v722
        %s742 = scalar_lea.vmem [#allocation5], 2
        %v743 = vld [vmem:[%s742] sm:$0x1]
        %v745 = vlaneseq
        %v746 = vshrl.u32 %v745, 7
        %v747 = vsub.s32 0, %v746
        %v748 = vrot.slane %v743, %v747
        %v766 = vunpack.c.l.b16 %v725
        %v767 = vunpack.c.l.b16 %v726
        %v768 = vunpack.c.l.b16 %v727
        %v769 = vunpack.c.l.b16 %v728
        %v770 = vunpack.c.l.b16 %v729
        %v771 = vunpack.c.l.b16 %v730
        %v772 = vunpack.c.l.b16 %v731
        %v773 = vunpack.c.l.b16 %v732
        %v774 = vunpack.c.l.b16 %v733
        %v775 = vunpack.c.l.b16 %v734
        %v776 = vunpack.c.l.b16 %v735
        %v777 = vunpack.c.l.b16 %v736
        %v778 = vunpack.c.l.b16 %v737
        %v779 = vunpack.c.l.b16 %v738
        %v780 = vunpack.c.l.b16 %v739
        %v781 = vunpack.c.l.b16 %v740
        %v782 = vpack.c.b16 %v767, %v766
        %v783 = vpack.c.b16 %v769, %v768
        %v784 = vpack.c.b16 %v771, %v770
        %v785 = vpack.c.b16 %v773, %v772
        %v786 = vpack.c.b16 %v775, %v774
        %v787 = vpack.c.b16 %v777, %v776
        %v788 = vpack.c.b16 %v779, %v778
        %v789 = vpack.c.b16 %v781, %v780
        %798 = vmatprep.subr.bf16.mxu0 0
        %799 = vmatpush1.bf16.msra.mxu0 %v789
        %800 = vmatprep.subr.bf16.mxu0 0
        %801 = vmatpush1.bf16.msra.mxu0 %v788
        %802 = vmatprep.subr.bf16.mxu0 0
        %803 = vmatpush1.bf16.msra.mxu0 %v787
        %804 = vmatprep.subr.bf16.mxu0 0
        %805 = vmatpush1.bf16.msra.mxu0 %v786
        %806 = vmatprep.subr.bf16.mxu0 0
        %807 = vmatpush1.bf16.msra.mxu0 %v785
        %808 = vmatprep.subr.bf16.mxu0 0
        %809 = vmatpush1.bf16.msra.mxu0 %v784
        %810 = vmatprep.subr.bf16.mxu0 0
        %811 = vmatpush1.bf16.msra.mxu0 %v783
        %812 = vmatprep.subr.bf16.mxu0 0
        %813 = vmatpush1.bf16.msra.mxu0 %v782
        %814 = vmatprep.subr.bf16.mxu0 0
        %815 = vmatpush2.bf16.msra.mxu0 0
        %816 = vmatprep.subr.bf16.mxu0 0
        %817 = vmatpush2.bf16.msra.mxu0 0
        %818 = vmatprep.subr.bf16.mxu0 0
        %819 = vmatpush2.bf16.msra.mxu0 0
        %820 = vmatprep.subr.bf16.mxu0 0
        %821 = vmatpush2.bf16.msra.mxu0 0
        %822 = vmatprep.subr.bf16.mxu0 0
        %823 = vmatpush2.bf16.msra.mxu0 0
        %824 = vmatprep.subr.bf16.mxu0 0
        %825 = vmatpush2.bf16.msra.mxu0 0
        %826 = vmatprep.subr.bf16.mxu0 0
        %827 = vmatpush2.bf16.msra.mxu0 0
        %828 = vmatprep.subr.bf16.mxu0 0
        %829 = vmatpush2.bf16.msra.mxu0 0
        %830 = vmatprep.mubr.bf16.mxu0 0
        %831 = vmatmul.mubr.bf16.gmra.mxu0 %v741
        %v832 = vpop.f32.mrf.mxu0
        %v833 = vadd.f32 %v748, %v832
        %v834 = vpop.f32.mrf.mxu0
        %v835 = vpop.f32.mrf.mxu0
        %v836 = vadd.f32 %v748, %v835
        %v837 = vpop.f32.mrf.mxu0
        %838 = vdwg.mxu0
        %v839 = vmax.f32 %v833, 0.0
        %v840 = vmax.f32 %v836, 0.0
        %v841 = vadd.f32 %v839, %v722
        %v842 = vadd.f32 %v840, %v723
        %v843 = vpack.c.bf16 %v842, %v841
        %v844 = vld [vmem:[#allocation6] sm:$0xf]
        %v845 = vld [vmem:[#allocation6 + $0x4] sm:$0xf]
        %v846 = vld [vmem:[#allocation6 + $0x8] sm:$0xf]
        %v847 = vld [vmem:[#allocation6 + $0xc] sm:$0xf]
        %v848 = vld [vmem:[#allocation6 + $0x10] sm:$0xf]
        %v849 = vld [vmem:[#allocation6 + $0x14] sm:$0xf]
        %v850 = vld [vmem:[#allocation6 + $0x18] sm:$0xf]
        %v851 = vld [vmem:[#allocation6 + $0x1c] sm:$0xf]
        %v852 = vld [vmem:[#allocation6 + $0x20] sm:$0xf]
        %v853 = vld [vmem:[#allocation6 + $0x24] sm:$0xf]
        %v854 = vld [vmem:[#allocation6 + $0x28] sm:$0xf]
        %v855 = vld [vmem:[#allocation6 + $0x2c] sm:$0xf]
        %v856 = vld [vmem:[#allocation6 + $0x30] sm:$0xf]
        %v857 = vld [vmem:[#allocation6 + $0x34] sm:$0xf]
        %v858 = vld [vmem:[#allocation6 + $0x38] sm:$0xf]
        %v859 = vld [vmem:[#allocation6 + $0x3c] sm:$0xf]
        %v860 = vld [vmem:[#allocation7] sm:$0x1]
        %v862 = vlaneseq
        %v863 = vshrl.u32 %v862, 7
        %v864 = vsub.s32 0, %v863
        %v865 = vrot.slane %v860, %v864
        %v883 = vunpack.c.l.b16 %v844
        %v884 = vunpack.c.l.b16 %v845
        %v885 = vunpack.c.l.b16 %v846
        %v886 = vunpack.c.l.b16 %v847
        %v887 = vunpack.c.l.b16 %v848
        %v888 = vunpack.c.l.b16 %v849
        %v889 = vunpack.c.l.b16 %v850
        %v890 = vunpack.c.l.b16 %v851
        %v891 = vunpack.c.l.b16 %v852
        %v892 = vunpack.c.l.b16 %v853
        %v893 = vunpack.c.l.b16 %v854
        %v894 = vunpack.c.l.b16 %v855
        %v895 = vunpack.c.l.b16 %v856
        %v896 = vunpack.c.l.b16 %v857
        %v897 = vunpack.c.l.b16 %v858
        %v898 = vunpack.c.l.b16 %v859
        %v899 = vpack.c.b16 %v884, %v883
        %v900 = vpack.c.b16 %v886, %v885
        %v901 = vpack.c.b16 %v888, %v887
        %v902 = vpack.c.b16 %v890, %v889
        %v903 = vpack.c.b16 %v892, %v891
        %v904 = vpack.c.b16 %v894, %v893
        %v905 = vpack.c.b16 %v896, %v895
        %v906 = vpack.c.b16 %v898, %v897
        %915 = vmatprep.subr.bf16.mxu0 0
        %916 = vmatpush1.bf16.msra.mxu0 %v906
        %917 = vmatprep.subr.bf16.mxu0 0
        %918 = vmatpush1.bf16.msra.mxu0 %v905
        %919 = vmatprep.subr.bf16.mxu0 0
        %920 = vmatpush1.bf16.msra.mxu0 %v904
        %921 = vmatprep.subr.bf16.mxu0 0
        %922 = vmatpush1.bf16.msra.mxu0 %v903
        %923 = vmatprep.subr.bf16.mxu0 0
        %924 = vmatpush1.bf16.msra.mxu0 %v902
        %925 = vmatprep.subr.bf16.mxu0 0
        %926 = vmatpush1.bf16.msra.mxu0 %v901
        %927 = vmatprep.subr.bf16.mxu0 0
        %928 = vmatpush1.bf16.msra.mxu0 %v900
        %929 = vmatprep.subr.bf16.mxu0 0
        %930 = vmatpush1.bf16.msra.mxu0 %v899
        %931 = vmatprep.subr.bf16.mxu0 0
        %932 = vmatpush2.bf16.msra.mxu0 0
        %933 = vmatprep.subr.bf16.mxu0 0
        %934 = vmatpush2.bf16.msra.mxu0 0
        %935 = vmatprep.subr.bf16.mxu0 0
        %936 = vmatpush2.bf16.msra.mxu0 0
        %937 = vmatprep.subr.bf16.mxu0 0
        %938 = vmatpush2.bf16.msra.mxu0 0
        %939 = vmatprep.subr.bf16.mxu0 0
        %940 = vmatpush2.bf16.msra.mxu0 0
        %941 = vmatprep.subr.bf16.mxu0 0
        %942 = vmatpush2.bf16.msra.mxu0 0
        %943 = vmatprep.subr.bf16.mxu0 0
        %944 = vmatpush2.bf16.msra.mxu0 0
        %945 = vmatprep.subr.bf16.mxu0 0
        %946 = vmatpush2.bf16.msra.mxu0 0
        %947 = vmatprep.mubr.bf16.mxu0 0
        %948 = vmatmul.mubr.bf16.gmra.mxu0 %v843
        %v949 = vpop.f32.mrf.mxu0
        %v950 = vadd.f32 %v865, %v949
        %v951 = vpop.f32.mrf.mxu0
        %v952 = vpop.f32.mrf.mxu0
        %v953 = vadd.f32 %v865, %v952
        %v954 = vpop.f32.mrf.mxu0
        %955 = vdwg.mxu0
        %v956 = vmul.f32 %v950, %v950
        %v957 = vmul.f32 %v953, %v953
        %958 = vadd.xlane.f32.xlu0 %v956
        %v959 = vpop.xlane.xlu0 %958
        %960 = vadd.xlane.f32.xlu0 %v957
        %v961 = vpop.xlane.xlu0 %960
        %v962 = vrsqrt.pop %v959
        %v963 = vrsqrt.pop %v961
        %v964 = vmul.f32 %v962, 1.4142135
        %v965 = vmul.f32 %v963, 1.4142135
        %v966 = vmul.f32 %v950, %v964
        %v967 = vmul.f32 %v953, %v965
        %968 = vst [vmem:[%s162] sm:$0xff] %v966
        %969 = vst [vmem:[%s162 + $0x8] sm:$0xff] %v967
        %s970 = sand.u32 %s78, 1
        %s971 = scalar_lea.sflag [#allocation10], %s970
        %s972 = sand.u32 %s78, 1
        %s973 = smul.addr %s972, 16
        %s974 = scalar_lea.vmem [#allocation11], %s973
        // Predicated region
        $region141: #{tpu_custom_call.1} parent=23 // pred_check
          %p975 = pneg %p88
        $region142: #{tpu_custom_call.1} parent=23 // pred_check_branch
          %977 = sbr.rel (%p975) target = $region144
        $region143: #{tpu_custom_call.1} parent=23 // pred_region
          %s978 = smul.u32 %s28, 2
          %s979 = sadd.s32 %s978, %s29
          %s980 = smul.u32 2, %s979
          %s982 = ssub.s32 256, 256
          %983 = vsyncadd %s971, %s982
          %s984 = smul.addr %s980, 128
          %s985 = scalar_lea.hbm %s7, %s984
          %s986 = sshll.u32 %s974, 4
          %s987 = int_to_ptr.vmem [resolvable:$true] %s986
          %992 = dma.vmem_to_hbm [thread:$0]  %s987, 256, %s985, %s971, 128, 128, 8
        $region144: #{tpu_custom_call.1} parent=23 // pred_fallthru
          _
      $region24: #{tpu_custom_call.1} parent=5 // pred_fallthru
        _
      %p993 = scmp.le.s32.totalorder 2, %s19
      // Predicated region
      $region145: #{tpu_custom_call.1} parent=5 // pred_check
        %p994 = pneg %p993
      $region146: #{tpu_custom_call.1} parent=5 // pred_check_branch
        %996 = sbr.rel (%p994) target = $region148
      $region147: #{tpu_custom_call.1} parent=5 // pred_region
        %s997 = ssub.s32 %s19, 2
        // Predicated region
        $region149: #{tpu_custom_call.1} parent=147 // pred_check
          %p998 = pneg %p94
        $region150: #{tpu_custom_call.1} parent=147 // pred_check_branch
          %1000 = sbr.rel (%p998) target = $region152
        $region151: #{tpu_custom_call.1} parent=147 // pred_region
          %s1001 = sand.u32 %s79, 1
          %s1002 = scalar_lea.sflag [#allocation10], %s1001
          %s1003 = sand.u32 %s79, 1
          %s1004 = smul.addr %s1003, 16
          %s1005 = scalar_lea.vmem [#allocation11], %s1004
          %1006 = dma.done %s1002, 256
        $region152: #{tpu_custom_call.1} parent=147 // pred_fallthru
          _
      $region148: #{tpu_custom_call.1} parent=5 // pred_fallthru
        _
    $region6: #{tpu_custom_call.1} parent=1 // loop_footer
      %s23 = sadd.s32 1, %s19
    $region7: #{tpu_custom_call.1} parent=1 // loop_footer_branch
      %18 = sbr.rel target = $region3
    $region8: #{tpu_custom_call.1} parent=1 // loop_exit
      _
    %1007 = vsyncpa [#allocation9], 1
    %s1008 = scalar_lea.sflag [#allocation9], 1
    %1009 = vsyncpa %s1008, 1
    %1010 = vsyncpa [#allocation10], 1
    %s1011 = scalar_lea.sflag [#allocation10], 1
    %1012 = vsyncpa %s1011, 1

</llo_original>
